<compile_context>
chip_gen: v5e
topology: v5e:2x2
jax: 0.10.0
libtpu: 0.0.40
codegen_flags: <defaults>
</compile_context>

<pallas_src>
import jax
import jax.numpy as jnp
from jax.experimental import pallas as pl
from jax.experimental.pallas import tpu as pltpu


def _linear_kernel(x_ref, w_ref, b_ref, o_ref):
    """Linear(2 -> 1) on one dense batch tile (pure VPU: two FMAs per lane).

    x_ref : VMEM (2, tr, 128)  feature-major, lane- and sublane-dense
    w_ref : SMEM (2,)          scalar weights
    b_ref : SMEM (1,)          scalar bias
    o_ref : VMEM (tr, 128)     dense output slab (unmasked stores)
    """
    y = x_ref[0] * w_ref[0] + x_ref[1] * w_ref[1] + b_ref[0]
    o_ref[...] = y.astype(o_ref.dtype)


def _round_up(n, m):
    return ((n + m - 1) // m) * m


def _pick_row_tile(rows, max_rows_per_block):
    """Tile size (rows of 128 lanes): big blocks, but >=2 grid steps when possible."""
    max_rows_per_block = max(8, (max_rows_per_block // 8) * 8)  # sublane multiple
    if rows <= 8:
        return rows  # single full-extent block (tiny batch)
    # Aim for >= 4 grid steps so both v7x TensorCores get >= 2 tiles each; the
    # sublane axis of a block must be a multiple of 8 (or the full extent).
    tr = _round_up(pl.cdiv(rows, 4), 8)
    return min(tr, max_rows_per_block)


def linear2x1_feature_major(x_fm, weight, bias, *, max_rows_per_block=4096):
    """y[b] = w0*x_fm[0, b] + w1*x_fm[1, b] + bias.

    x_fm: (2, B) f32 feature-major input (no wrapper-side data movement beyond
    free reshapes; zero-pad only if B is not a multiple of 128).
    Returns (B, 1) f32 — identical semantics to torch.nn.Linear(2, 1).
    """
    in_f, B = x_fm.shape
    out_f, wk = weight.shape
    assert in_f == 2 and wk == 2 and out_f == 1

    # Zero-pad the batch to a multiple of 128 lanes only when needed.
    B_pad = _round_up(B, 128)
    if B_pad != B:
        x_fm = jnp.pad(x_fm, ((0, 0), (0, B_pad - B)))
    rows = B_pad // 128

    # Free, contiguous reshapes: lane-dense (..., 128) slabs, no sublane padding.
    x3 = x_fm.reshape(in_f, rows, 128)
    w_vec = weight.reshape(in_f).astype(jnp.float32)   # (2,)  -> SMEM
    b_vec = bias.reshape(out_f).astype(jnp.float32)    # (1,)  -> SMEM

    tr = _pick_row_tile(rows, max_rows_per_block)
    grid = (pl.cdiv(rows, tr),)

    out2d = pl.pallas_call(
        _linear_kernel,
        out_shape=jax.ShapeDtypeStruct((rows, 128), x_fm.dtype),
        grid_spec=pltpu.PrefetchScalarGridSpec(
            num_scalar_prefetch=0,
            grid=grid,
            in_specs=[
                # x tile: (2, tr, 128) dense slabs, auto double-buffered.
                pl.BlockSpec((in_f, tr, 128), lambda i: (0, i, 0)),
                # weight / bias: whole arrays resident in SMEM (no VMEM tiles,
                # no per-step DMA for 3 floats).
                pl.BlockSpec(memory_space=pltpu.MemorySpace.SMEM),
                pl.BlockSpec(memory_space=pltpu.MemorySpace.SMEM),
            ],
            out_specs=pl.BlockSpec((tr, 128), lambda i: (i, 0)),
        ),
        compiler_params=pltpu.CompilerParams(
            # Batch tiles are independent -> megacore / 2-TC sharding on v7x.
            dimension_semantics=("parallel",),
            # ~12 MiB double-buffered working set; be explicit so v5e's 16 MiB
            # scoped default never shrinks the pipeline, while staying well
            # inside v7x's 64 MiB physical VMEM.
            vmem_limit_bytes=32 * 1024 * 1024,
        ),
    )(x3, w_vec, b_vec)

    y = out2d.reshape(B_pad, 1)       # free metadata reshape, no transpose
    return y if B_pad == B else y[:B]


def linear_forward(x, weight, bias, *, max_rows_per_block=4096):
    """torch.nn.Linear(2, 1) semantics: x (B, 2) f32 -> (B, 1) f32."""
    B, in_f = x.shape
    assert in_f == 2
    # TODO(synk): this transpose costs one extra HBM read+write of x (~2.3x the
    # ideal traffic); producers should call linear2x1_feature_major directly or
    # fuse this op as the epilogue of the kernel that produces x.
    x_fm = x.T
    return linear2x1_feature_major(
        x_fm, weight, bias, max_rows_per_block=max_rows_per_block)


if __name__ == "__main__":
    key = jax.random.PRNGKey(0)
    kx, kw, kb = jax.random.split(key, 3)

    # Small shapes consistent with nn.Linear(2, 1): batch=8, in_features=2.
    B, IN_F, OUT_F = 8, 2, 1
    x = jax.random.normal(kx, (B, IN_F), dtype=jnp.float32)

    # Deterministic parameter init (mimics nn.Linear's uniform(-1/sqrt(in), +)).
    bound = 1.0 / jnp.sqrt(jnp.float32(IN_F))
    weight = jax.random.uniform(kw, (OUT_F, IN_F), minval=-bound, maxval=bound,
                                dtype=jnp.float32)
    bias = jax.random.uniform(kb, (OUT_F,), minval=-bound, maxval=bound,
                              dtype=jnp.float32)

    # torch-layout path (x: (B, 2)) at the module's natural small batch.
    out = jax.block_until_ready(linear_forward(x, weight, bias))
    ref = x @ weight.T + bias
    assert out.shape == (B, OUT_F)
    assert jnp.allclose(out, ref, atol=1e-5, rtol=1e-5)

    # Multi-block / ragged-batch path: cdiv grid, masked tail block, >=2
    # "parallel" grid steps, zero-padding of the non-multiple-of-128 batch.
    B2 = 4133
    x2 = jax.random.normal(kx, (B2, IN_F), dtype=jnp.float32)
    out2 = jax.block_until_ready(linear_forward(x2, weight, bias))
    ref2 = x2 @ weight.T + bias
    assert out2.shape == (B2, OUT_F)
    assert jnp.allclose(out2, ref2, atol=1e-5, rtol=1e-5)

    # Feature-major fast path (what a producer kernel should hand over directly;
    # no wrapper-side transpose inside this call).
    x_fm = jnp.asarray(x2.T)
    out3 = jax.block_until_ready(linear2x1_feature_major(x_fm, weight, bias))
    assert out3.shape == (B2, OUT_F)
    assert jnp.allclose(out3, ref2, atol=1e-5, rtol=1e-5)

    print("KERNEL_OK")
</pallas_src>

<mosaic_0001>
module attributes {stable_mosaic.version = 11 : i64} {
  func.func @_linear_kernel(%arg0: i32, %arg1: memref<2x1x128xf32, #tpu.memory_space<vmem>>, %arg2: memref<2xf32, #tpu.memory_space<smem>>, %arg3: memref<1xf32, #tpu.memory_space<smem>>, %arg4: memref<1x128xf32, #tpu.memory_space<vmem>>) attributes {dimension_semantics = [#tpu.dimension_semantics<parallel>], iteration_bounds = array<i64: 1>, scalar_prefetch = 0 : i64, scratch_operands = 0 : i64, tpu.core_type = #tpu.core_type<tc>, window_params = [{transform_indices = @transform_0, window_bounds = array<i64: 2, 1, 128>}, {transform_indices = @transform_1, window_bounds = array<i64: 2>}, {transform_indices = @transform_2, window_bounds = array<i64: 1>}, {transform_indices = @transform_3, window_bounds = array<i64: 1, 128>}]} {
    %c0 = arith.constant 0 : index
    %c0_0 = arith.constant 0 : index
    %c0_1 = arith.constant 0 : index
    %0 = vector.load %arg1[%c0, %c0_0, %c0_1] : memref<2x1x128xf32, #tpu.memory_space<vmem>>, vector<1x1x128xf32>
    %1 = vector.shape_cast %0 : vector<1x1x128xf32> to vector<1x128xf32>
    %c0_2 = arith.constant 0 : index
    %2 = memref.load %arg2[%c0_2] : memref<2xf32, #tpu.memory_space<smem>>
    %3 = vector.broadcast %2 : f32 to vector<1x128xf32>
    %4 = arith.mulf %1, %3 : vector<1x128xf32>
    %c1 = arith.constant 1 : index
    %c0_3 = arith.constant 0 : index
    %c0_4 = arith.constant 0 : index
    %5 = vector.load %arg1[%c1, %c0_3, %c0_4] : memref<2x1x128xf32, #tpu.memory_space<vmem>>, vector<1x1x128xf32>
    %6 = vector.shape_cast %5 : vector<1x1x128xf32> to vector<1x128xf32>
    %c1_5 = arith.constant 1 : index
    %7 = memref.load %arg2[%c1_5] : memref<2xf32, #tpu.memory_space<smem>>
    %8 = vector.broadcast %7 : f32 to vector<1x128xf32>
    %9 = arith.mulf %6, %8 : vector<1x128xf32>
    %10 = arith.addf %4, %9 : vector<1x128xf32>
    %c0_6 = arith.constant 0 : index
    %11 = memref.load %arg3[%c0_6] : memref<1xf32, #tpu.memory_space<smem>>
    %12 = vector.broadcast %11 : f32 to vector<1x128xf32>
    %13 = arith.addf %10, %12 : vector<1x128xf32>
    %c0_7 = arith.constant 0 : index
    %c0_8 = arith.constant 0 : index
    %14 = vector.load %arg4[%c0_7, %c0_8] : memref<1x128xf32, #tpu.memory_space<vmem>>, vector<1x128xf32>
    tpu.vector_store %arg4[%c0_7, %c0_8], %13 {strides = array<i32>} : memref<1x128xf32, #tpu.memory_space<vmem>>, vector<1x128xf32>,
    return
  }
  func.func @transform_0(%arg0: i32) -> (i32, i32, i32) {
    %c0_i32 = arith.constant 0 : i32
    %c0_i32_0 = arith.constant 0 : i32
    %c0_i32_1 = arith.constant 0 : i32
    return %c0_i32, %arg0, %c0_i32_0 : i32, i32, i32
  }
  func.func @transform_1(%arg0: i32) -> i32 {
    %c0_i32 = arith.constant 0 : i32
    %c0_i32_0 = arith.constant 0 : i32
    return %c0_i32 : i32
  }
  func.func @transform_2(%arg0: i32) -> i32 {
    %c0_i32 = arith.constant 0 : i32
    %c0_i32_0 = arith.constant 0 : i32
    return %c0_i32 : i32
  }
  func.func @transform_3(%arg0: i32) -> (i32, i32) {
    %c0_i32 = arith.constant 0 : i32
    %c0_i32_0 = arith.constant 0 : i32
    return %arg0, %c0_i32 : i32, i32
  }
}

</mosaic_0001>

<llo_original>
// kernel: tpu_custom_call.1
$region0: #{tpu_custom_call.1}
  #allocation0 [shape = 'u32[]', space=smem, size = 0x4, offset = 0x4, fixed_abs, tag = 'smem constant byte address 0x4 - core index']
  #allocation1 [shape = 'u32[72,128]{1,0:T(1,128)}', space=vmem, size = 0x9000, scoped, tag = 'internal scratch']
  #allocation2 [shape = 'f32[1]{0:T(128)S(6)}', space=smem, size = 0x200, scoped, tag = 'scoped memory for tpu_custom_call.1']
  %s0 = inlined_call_operand.vmem [shape: f32[2,1,128], index: 0, kind: input, shape index: {}]
  %s1 = inlined_call_operand.hbm [shape: f32[2], index: 1, kind: input, shape index: {}]
  %s2 = inlined_call_operand.<no memory space> [shape: f32[1], index: 2, kind: input, shape index: {}]
  %s3 = inlined_call_operand.hbm [shape: f32[1,128], index: 3, kind: output, shape index: {}]
  %s4 = sld [smem:[#allocation0]]
  $region26: #{tpu_custom_call.1} parent=0
    _
  %s6 = ssub.s32 1, %s4
  %s7 = scalar_select 0, %s6, %s4
  %8 = sst [smem:[#allocation2]] %s2
  $region1: #{tpu_custom_call.1} parent=0
    #allocation3 [shape = 'u8[512]{0}', space=smem, size = 0x200, scoped, tag = 'input window, operand 1, single buffered']
    #allocation4 [shape = 's32[1]{0}', space=sflag, size = 0x4, scoped, tag = 'scoped memory for tpu_custom_call.1']
    #allocation5 [shape = 's32[1]{0}', space=sflag, size = 0x4, scoped, tag = 'scoped memory for tpu_custom_call.1']
    #allocation6 [shape = 'u8[512]{0}', space=vmem, size = 0x400, scoped, tag = 'output window, operand 0, single buffered']
    %9 = vsyncpa [#allocation5], 0
    %10 = vsyncpa [#allocation4], 0
    // Predicated region
    $region2: #{tpu_custom_call.1} parent=1 // pred_check
      _
    $region3: #{tpu_custom_call.1} parent=1 // pred_check_branch
      %12 = sbr.rel (0) target = $region5
    $region4: #{tpu_custom_call.1} parent=1 // pred_region
      _
    $region5: #{tpu_custom_call.1} parent=1 // pred_fallthru
      _
    // Predicated region
    $region6: #{tpu_custom_call.1} parent=1 // pred_check
      _
    $region7: #{tpu_custom_call.1} parent=1 // pred_check_branch
      %14 = sbr.rel (0) target = $region9
    $region8: #{tpu_custom_call.1} parent=1 // pred_region
      %16 = vsyncadd [#allocation5], 0
      %s18 = sshll.u32 %s1, 4
      %s19 = int_to_ptr.hbm [resolvable:$true] %s18
      %21 = dma.hbm_to_smem %s19, 16, [#allocation3], [#allocation5]
    $region9: #{tpu_custom_call.1} parent=1 // pred_fallthru
      _
    // Predicated region
    $region10: #{tpu_custom_call.1} parent=1 // pred_check
      _
    $region11: #{tpu_custom_call.1} parent=1 // pred_check_branch
      %23 = sbr.rel (0) target = $region13
    $region12: #{tpu_custom_call.1} parent=1 // pred_region
      _
    $region13: #{tpu_custom_call.1} parent=1 // pred_fallthru
      _
    // Predicated region
    $region14: #{tpu_custom_call.1} parent=1 // pred_check
      _
    $region15: #{tpu_custom_call.1} parent=1 // pred_check_branch
      %25 = sbr.rel (0) target = $region17
    $region16: #{tpu_custom_call.1} parent=1 // pred_region
      %27 = dma.done [#allocation5], 16
    $region17: #{tpu_custom_call.1} parent=1 // pred_fallthru
      _
    %28 = sfence
    %v29 = vld [vmem:[%s0] sm:$0x1]
    %s30 = sld [smem:[#allocation3]]
    %v31 = vstv %s30
    %v32 = vmul.f32 %v29, %v31
    %s33 = scalar_lea.vmem %s0, 1
    %v34 = vld [vmem:[%s33] sm:$0x1]
    %s35 = sld [smem:[#allocation3 + $0x1]]
    %v36 = vstv %s35
    %v37 = vmul.f32 %v34, %v36
    %v38 = vadd.f32 %v32, %v37
    %s39 = sld [smem:[#allocation2]]
    %v40 = vstv %s39
    %v41 = vadd.f32 %v38, %v40
    %42 = vst [vmem:[#allocation6] sm:$0x1] %v41
    // Predicated region
    $region18: #{tpu_custom_call.1} parent=1 // pred_check
      _
    $region19: #{tpu_custom_call.1} parent=1 // pred_check_branch
      %44 = sbr.rel (0) target = $region21
    $region20: #{tpu_custom_call.1} parent=1 // pred_region
      %46 = vsyncadd [#allocation4], 0
      %s48 = sshll.u32 [#allocation6], 4
      %s49 = int_to_ptr.vmem [resolvable:$true] %s48
      %s50 = sshll.u32 %s3, 4
      %s51 = int_to_ptr.hbm [resolvable:$true] %s50
      %53 = dma.vmem_to_hbm [thread:$0]  %s49, 16, %s51, [#allocation4]
    $region21: #{tpu_custom_call.1} parent=1 // pred_fallthru
      _
    // Predicated region
    $region22: #{tpu_custom_call.1} parent=1 // pred_check
      _
    $region23: #{tpu_custom_call.1} parent=1 // pred_check_branch
      %55 = sbr.rel (0) target = $region25
    $region24: #{tpu_custom_call.1} parent=1 // pred_region
      %57 = dma.done [#allocation4], 16
    $region25: #{tpu_custom_call.1} parent=1 // pred_fallthru
      _
    %58 = vsyncpa [#allocation4], 1
    %59 = vsyncpa [#allocation5], 1

</llo_original>
